<compile_context>
chip_gen: v6e
topology: v6e:2x2x1
jax: 0.10.0
libtpu: 0.0.40
codegen_flags: <defaults>
</compile_context>

<pallas_src>
import numpy as np
import jax
import jax.numpy as jnp
from jax.experimental import pallas as pl
from jax.experimental.pallas import tpu as pltpu


def _bilinear_matrix(out_size: int, in_size: int) -> np.ndarray:
    """1-D bilinear interpolation matrix, PyTorch align_corners=False semantics."""
    if in_size == 1:
        return np.ones((out_size, 1), dtype=np.float32)
    scale = in_size / out_size
    i = np.arange(out_size, dtype=np.float64)
    src = (i + 0.5) * scale - 0.5
    src = np.maximum(src, 0.0)                       # PyTorch clamps negative source coords
    idx0 = np.clip(np.floor(src).astype(np.int64), 0, in_size - 1)
    idx1 = np.minimum(idx0 + 1, in_size - 1)
    frac = src - idx0
    A = np.zeros((out_size, in_size), dtype=np.float64)
    A[np.arange(out_size), idx0] += (1.0 - frac)
    A[np.arange(out_size), idx1] += frac
    return A.astype(np.float32)


# ---------------------------------------------------------------------------
# Pass 1: channel-attention gate (global pools -> conv1x1 -> relu -> conv1x1 -> sigmoid)
# ---------------------------------------------------------------------------
def _gate_kernel(s_ref, d_ref, w1a_ref, w1b_ref, b1_ref, w2_ref, b2_ref, g_ref):
    # s_ref: (1, C, Hs*Ws)   d_ref: (1, C, Hd*Wd)
    # w1a/w1b/w2: (C, C)     b1/b2: (C, 1)          g_ref: (1, C, 1)
    sp = jnp.mean(s_ref[0], axis=1, keepdims=True)           # (C, 1)  adaptive_avg_pool2d -> (1,1)
    dp = jnp.mean(d_ref[0], axis=1, keepdims=True)           # (C, 1)
    # conv1x1 on cat([sp, dp], channel) == w1[:, :C] @ sp + w1[:, C:] @ dp   (no sublane concat)
    h = (jnp.dot(w1a_ref[...], sp, preferred_element_type=jnp.float32)
         + jnp.dot(w1b_ref[...], dp, preferred_element_type=jnp.float32)
         + b1_ref[...])
    h = jnp.maximum(h, 0.0)
    y = jnp.dot(w2_ref[...], h, preferred_element_type=jnp.float32) + b2_ref[...]
    g_ref[0] = jax.nn.sigmoid(y).astype(g_ref.dtype)


# ---------------------------------------------------------------------------
# Pass 2: separable bilinear upsample of `deeper`, fused with `shallower * gate + up`,
#         tiled over the output rows (Hs).
# ---------------------------------------------------------------------------
def _cab_main_kernel(d_ref, s_ref, g_ref, awt_ref, ah_ref, o_ref):
    # d_ref: (1, C*Hd, Wd)   s_ref / o_ref: (1, C, tile_h, Ws)   g_ref: (1, C, 1)
    # awt_ref: (Wd, Ws)      ah_ref: (tile_h, Hd)
    th, hd = ah_ref.shape
    _, ws = awt_ref.shape
    c = d_ref.shape[1] // hd
    cdtype = awt_ref.dtype                                    # bf16 (fast) or f32 (exact)

    # Separable bilinear upsample (align_corners=False), f32 accumulation on the MXU.
    d = d_ref[0].astype(cdtype)                               # (C*Hd, Wd)
    t = jnp.dot(d, awt_ref[...], preferred_element_type=jnp.float32)   # (C*Hd, Ws)  W-contraction
    t = t.reshape(c, hd, ws).astype(cdtype)                   # (C, Hd, Ws)
    ah = jnp.broadcast_to(ah_ref[...][None, :, :], (c, th, hd))
    up = jax.lax.dot_general(                                  # H-contraction, C as batch
        ah, t,
        dimension_numbers=(((2,), (1,)), ((0,), (0,))),
        preferred_element_type=jnp.float32)                    # (C, tile_h, Ws)

    s = s_ref[0]                                               # (C, tile_h, Ws)
    g = g_ref[0]                                               # (C, 1)
    o_ref[0] = (s * g[:, :, None] + up).astype(o_ref.dtype)


def _pick_tile_h(C, Hs, Ws, itemsize=4, budget_bytes=8 << 20):
    """Largest multiple-of-8 divisor of Hs whose per-step tiles (s, up, out) fit a VMEM budget."""
    if Hs % 8 != 0:
        return Hs                    # full-extent block is always legal
    best = 8
    for t in range(8, Hs + 1, 8):
        if Hs % t == 0 and 3 * C * t * Ws * itemsize <= budget_bytes:
            best = t
    return best


def cab_forward(deeper, shallower, params, deepest=False, *,
                tile_h=None, compute_dtype=jnp.bfloat16):
    """deeper: (B, C, Hd, Wd), shallower: (B, C, Hs, Ws) -> (B, C, Hs, Ws).

    compute_dtype: dtype of the MXU operands of the bilinear upsample (accumulation is always
    f32). bfloat16 halves MXU passes and operand footprint; use float32 for exact results.
    """
    w1, b1, w2, b2 = params
    B, C, Hd, Wd = deeper.shape
    Bs, Cs, Hs, Ws = shallower.shape
    assert B == Bs and C == Cs
    if deepest:
        assert (Hd, Wd) == (1, 1), "deepest=True requires globally pooled `deeper`"

    # Separable 1-D bilinear interpolation matrices (PyTorch align_corners=False).
    AwT = jnp.asarray(_bilinear_matrix(Ws, Wd).T).astype(compute_dtype)    # (Wd, Ws)
    Ah = jnp.asarray(_bilinear_matrix(Hs, Hd)).astype(compute_dtype)       # (Hs, Hd)

    # ---- pass 1: gate (B, C, 1) ------------------------------------------------------
    # (For very large feature maps the pooling could itself be spatially tiled with an
    #  accumulator; at typical segmentation sizes the per-batch block fits VMEM easily.)
    s_flat = shallower.reshape(B, C, Hs * Ws)
    d_flat = deeper.reshape(B, C, Hd * Wd)
    w1a, w1b = w1[:, :C], w1[:, C:]
    b1c, b2c = b1.reshape(C, 1), b2.reshape(C, 1)

    gate = pl.pallas_call(
        _gate_kernel,
        out_shape=jax.ShapeDtypeStruct((B, C, 1), jnp.float32),
        grid_spec=pltpu.PrefetchScalarGridSpec(
            num_scalar_prefetch=0,
            grid=(B,),
            in_specs=[
                pl.BlockSpec((1, C, Hs * Ws), lambda b: (b, 0, 0)),   # shallower (flattened HW)
                pl.BlockSpec((1, C, Hd * Wd), lambda b: (b, 0, 0)),   # deeper (flattened HW)
                pl.BlockSpec((C, C), lambda b: (0, 0)),               # w1[:, :C]
                pl.BlockSpec((C, C), lambda b: (0, 0)),               # w1[:, C:]
                pl.BlockSpec((C, 1), lambda b: (0, 0)),               # b1
                pl.BlockSpec((C, C), lambda b: (0, 0)),               # w2
                pl.BlockSpec((C, 1), lambda b: (0, 0)),               # b2
            ],
            out_specs=pl.BlockSpec((1, C, 1), lambda b: (b, 0, 0)),
        ),
        compiler_params=pltpu.CompilerParams(
            dimension_semantics=("parallel",),
            vmem_limit_bytes=48 * 1024 * 1024),
    )(s_flat, d_flat, w1a, w1b, b1c, w2, b2c)

    # ---- pass 2: separable upsample + scale + add, tiled over Hs -----------------------
    if tile_h is None:
        tile_h = _pick_tile_h(C, Hs, Ws, itemsize=shallower.dtype.itemsize)
    assert Hs % tile_h == 0 and (tile_h % 8 == 0 or tile_h == Hs)
    n_tiles = Hs // tile_h

    d2 = deeper.reshape(B, C * Hd, Wd)

    out = pl.pallas_call(
        _cab_main_kernel,
        out_shape=jax.ShapeDtypeStruct((B, C, Hs, Ws), shallower.dtype),
        grid_spec=pltpu.PrefetchScalarGridSpec(
            num_scalar_prefetch=0,
            grid=(B, n_tiles),
            in_specs=[
                pl.BlockSpec((1, C * Hd, Wd), lambda b, i: (b, 0, 0)),        # deeper (small)
                pl.BlockSpec((1, C, tile_h, Ws), lambda b, i: (b, 0, i, 0)),  # shallower row-tile
                pl.BlockSpec((1, C, 1), lambda b, i: (b, 0, 0)),              # gate
                # NOTE: constant-index operands could be single-buffered (pl.Buffered(1));
                # they are tiny so the default double-buffering is kept for robustness.
                pl.BlockSpec((Wd, Ws), lambda b, i: (0, 0)),                  # Aw^T
                pl.BlockSpec((tile_h, Hd), lambda b, i: (i, 0)),              # Ah row-tile
            ],
            out_specs=pl.BlockSpec((1, C, tile_h, Ws), lambda b, i: (b, 0, i, 0)),
        ),
        compiler_params=pltpu.CompilerParams(
            dimension_semantics=("parallel", "parallel"),   # both axes shardable (v7x megacore)
            vmem_limit_bytes=48 * 1024 * 1024),
    )(d2, shallower, gate, AwT, Ah)

    return out


def cab_reference(deeper, shallower, params):
    """Pure-JAX reference mirroring the PyTorch forward (deepest=False path)."""
    w1, b1, w2, b2 = params
    _, _, Hd, Wd = deeper.shape
    _, _, Hs, Ws = shallower.shape
    sp = jnp.mean(shallower, axis=(2, 3))                 # (B, C)
    dp = jnp.mean(deeper, axis=(2, 3))                    # (B, C)
    g = jnp.concatenate([sp, dp], axis=1)                 # (B, 2C)
    h = jax.nn.relu(g @ w1.T + b1)
    y = h @ w2.T + b2
    gate = jax.nn.sigmoid(y)[:, :, None, None]
    Ah = jnp.asarray(_bilinear_matrix(Hs, Hd))
    Aw = jnp.asarray(_bilinear_matrix(Ws, Wd))
    up = jnp.einsum('hp,bcpq,wq->bchw', Ah, deeper, Aw)
    return shallower * gate + up


if __name__ == "__main__":
    key = jax.random.PRNGKey(0)
    k1, k2, k3, k4, k5, k6 = jax.random.split(key, 6)

    B, oc = 2, 8
    Hs = Ws = 16
    Hd = Wd = 8

    # Conv weights squeezed from (out, in, 1, 1) to (out, in).
    w1 = 0.1 * jax.random.normal(k1, (oc, 2 * oc), dtype=jnp.float32)
    b1 = 0.1 * jax.random.normal(k2, (oc,), dtype=jnp.float32)
    w2 = 0.1 * jax.random.normal(k3, (oc, oc), dtype=jnp.float32)
    b2 = 0.1 * jax.random.normal(k4, (oc,), dtype=jnp.float32)
    params = (w1, b1, w2, b2)

    deeper = jax.random.normal(k5, (B, oc, Hd, Wd), dtype=jnp.float32)
    shallower = jax.random.normal(k6, (B, oc, Hs, Ws), dtype=jnp.float32)

    ref = jax.block_until_ready(cab_reference(deeper, shallower, params))

    # Exact path (f32 MXU operands), explicitly tiled over Hs to exercise the spatial grid axis.
    out_f32 = jax.block_until_ready(
        cab_forward(deeper, shallower, params, deepest=False,
                    compute_dtype=jnp.float32, tile_h=8))
    np.testing.assert_allclose(np.asarray(out_f32), np.asarray(ref), rtol=1e-5, atol=1e-5)

    # Fast path (bf16 upsample operands, f32 accumulation), auto-picked tile.
    out_bf16 = jax.block_until_ready(
        cab_forward(deeper, shallower, params, deepest=False,
                    compute_dtype=jnp.bfloat16))
    np.testing.assert_allclose(np.asarray(out_bf16), np.asarray(ref), rtol=3e-2, atol=3e-2)

    print("KERNEL_OK")
</pallas_src>

<mosaic_0001>
module attributes {stable_mosaic.version = 11 : i64} {
  func.func @_gate_kernel(%arg0: i32, %arg1: memref<1x8x256xf32, #tpu.memory_space<vmem>>, %arg2: memref<1x8x64xf32, #tpu.memory_space<vmem>>, %arg3: memref<8x8xf32, #tpu.memory_space<vmem>>, %arg4: memref<8x8xf32, #tpu.memory_space<vmem>>, %arg5: memref<8x1xf32, #tpu.memory_space<vmem>>, %arg6: memref<8x8xf32, #tpu.memory_space<vmem>>, %arg7: memref<8x1xf32, #tpu.memory_space<vmem>>, %arg8: memref<1x8x1xf32, #tpu.memory_space<vmem>>) attributes {dimension_semantics = [#tpu.dimension_semantics<parallel>], iteration_bounds = array<i64: 2>, scalar_prefetch = 0 : i64, scratch_operands = 0 : i64, tpu.core_type = #tpu.core_type<tc>, window_params = [{transform_indices = @transform_0, window_bounds = array<i64: 1, 8, 256>}, {transform_indices = @transform_1, window_bounds = array<i64: 1, 8, 64>}, {pipeline_mode = #tpu.pipeline_mode<synchronous>, transform_indices = @transform_2, window_bounds = array<i64: 8, 8>}, {pipeline_mode = #tpu.pipeline_mode<synchronous>, transform_indices = @transform_3, window_bounds = array<i64: 8, 8>}, {pipeline_mode = #tpu.pipeline_mode<synchronous>, transform_indices = @transform_4, window_bounds = array<i64: 8, 1>}, {pipeline_mode = #tpu.pipeline_mode<synchronous>, transform_indices = @transform_5, window_bounds = array<i64: 8, 8>}, {pipeline_mode = #tpu.pipeline_mode<synchronous>, transform_indices = @transform_6, window_bounds = array<i64: 8, 1>}, {transform_indices = @transform_7, window_bounds = array<i64: 1, 8, 1>}]} {
    %c0 = arith.constant 0 : index
    %c0_0 = arith.constant 0 : index
    %c0_1 = arith.constant 0 : index
    %0 = vector.load %arg1[%c0, %c0_0, %c0_1] : memref<1x8x256xf32, #tpu.memory_space<vmem>>, vector<1x8x256xf32>
    %1 = vector.shape_cast %0 : vector<1x8x256xf32> to vector<8x256xf32>
    %cst = arith.constant dense<0.000000e+00> : vector<8xf32>
    %2 = vector.multi_reduction <add>, %1, %cst [1] : vector<8x256xf32> to vector<8xf32>
    %3 = vector.shape_cast %2 : vector<8xf32> to vector<8x1xf32>
    %cst_2 = arith.constant 2.560000e+02 : f32
    %4 = vector.broadcast %cst_2 : f32 to vector<8x1xf32>
    %5 = arith.divf %3, %4 : vector<8x1xf32>
    %c0_3 = arith.constant 0 : index
    %c0_4 = arith.constant 0 : index
    %c0_5 = arith.constant 0 : index
    %6 = vector.load %arg2[%c0_3, %c0_4, %c0_5] : memref<1x8x64xf32, #tpu.memory_space<vmem>>, vector<1x8x64xf32>
    %7 = vector.shape_cast %6 : vector<1x8x64xf32> to vector<8x64xf32>
    %cst_6 = arith.constant dense<0.000000e+00> : vector<8xf32>
    %8 = vector.multi_reduction <add>, %7, %cst_6 [1] : vector<8x64xf32> to vector<8xf32>
    %9 = vector.shape_cast %8 : vector<8xf32> to vector<8x1xf32>
    %cst_7 = arith.constant 6.400000e+01 : f32
    %10 = vector.broadcast %cst_7 : f32 to vector<8x1xf32>
    %11 = arith.divf %9, %10 : vector<8x1xf32>
    %c0_8 = arith.constant 0 : index
    %c0_9 = arith.constant 0 : index
    %12 = vector.load %arg3[%c0_8, %c0_9] : memref<8x8xf32, #tpu.memory_space<vmem>>, vector<8x8xf32>
    %cst_10 = arith.constant dense<0.000000e+00> : vector<8x1xf32>
    %13 = tpu.matmul %12, %5, %cst_10 {dimension_numbers = #tpu.dot_dimension_numbers<[1], [0], [0], [1], [0, 0, 1, 1], [], []>} : vector<8x8xf32>, vector<8x1xf32>, vector<8x1xf32> -> vector<8x1xf32>
    %c0_11 = arith.constant 0 : index
    %c0_12 = arith.constant 0 : index
    %14 = vector.load %arg4[%c0_11, %c0_12] : memref<8x8xf32, #tpu.memory_space<vmem>>, vector<8x8xf32>
    %cst_13 = arith.constant dense<0.000000e+00> : vector<8x1xf32>
    %15 = tpu.matmul %14, %11, %cst_13 {dimension_numbers = #tpu.dot_dimension_numbers<[1], [0], [0], [1], [0, 0, 1, 1], [], []>} : vector<8x8xf32>, vector<8x1xf32>, vector<8x1xf32> -> vector<8x1xf32>
    %16 = arith.addf %13, %15 : vector<8x1xf32>
    %c0_14 = arith.constant 0 : index
    %c0_15 = arith.constant 0 : index
    %17 = vector.load %arg5[%c0_14, %c0_15] : memref<8x1xf32, #tpu.memory_space<vmem>>, vector<8x1xf32>
    %18 = arith.addf %16, %17 : vector<8x1xf32>
    %cst_16 = arith.constant 0.000000e+00 : f32
    %19 = vector.broadcast %cst_16 : f32 to vector<8x1xf32>
    %20 = arith.maximumf %18, %19 : vector<8x1xf32>
    %c0_17 = arith.constant 0 : index
    %c0_18 = arith.constant 0 : index
    %21 = vector.load %arg6[%c0_17, %c0_18] : memref<8x8xf32, #tpu.memory_space<vmem>>, vector<8x8xf32>
    %cst_19 = arith.constant dense<0.000000e+00> : vector<8x1xf32>
    %22 = tpu.matmul %21, %20, %cst_19 {dimension_numbers = #tpu.dot_dimension_numbers<[1], [0], [0], [1], [0, 0, 1, 1], [], []>} : vector<8x8xf32>, vector<8x1xf32>, vector<8x1xf32> -> vector<8x1xf32>
    %c0_20 = arith.constant 0 : index
    %c0_21 = arith.constant 0 : index
    %23 = vector.load %arg7[%c0_20, %c0_21] : memref<8x1xf32, #tpu.memory_space<vmem>>, vector<8x1xf32>
    %24 = arith.addf %22, %23 : vector<8x1xf32>
    %25 = arith.negf %24 : vector<8x1xf32>
    %26 = math.exp %25 : vector<8x1xf32>
    %cst_22 = arith.constant 1.000000e+00 : f32
    %27 = vector.broadcast %cst_22 : f32 to vector<8x1xf32>
    %28 = arith.addf %27, %26 : vector<8x1xf32>
    %29 = arith.divf %27, %28 : vector<8x1xf32>
    %c0_23 = arith.constant 0 : index
    %c0_24 = arith.constant 0 : index
    %c0_25 = arith.constant 0 : index
    %30 = vector.load %arg8[%c0_23, %c0_24, %c0_25] : memref<1x8x1xf32, #tpu.memory_space<vmem>>, vector<1x8x1xf32>
    %31 = vector.shape_cast %30 : vector<1x8x1xf32> to vector<8x1xf32>
    %32 = vector.shape_cast %29 : vector<8x1xf32> to vector<1x8x1xf32>
    tpu.vector_store %arg8[%c0_23, %c0_24, %c0_25], %32 {strides = array<i32>} : memref<1x8x1xf32, #tpu.memory_space<vmem>>, vector<1x8x1xf32>,
    return
  }
  func.func @transform_0(%arg0: i32) -> (i32, i32, i32) {
    %c0_i32 = arith.constant 0 : i32
    %c0_i32_0 = arith.constant 0 : i32
    %c0_i32_1 = arith.constant 0 : i32
    return %arg0, %c0_i32, %c0_i32_0 : i32, i32, i32
  }
  func.func @transform_1(%arg0: i32) -> (i32, i32, i32) {
    %c0_i32 = arith.constant 0 : i32
    %c0_i32_0 = arith.constant 0 : i32
    %c0_i32_1 = arith.constant 0 : i32
    return %arg0, %c0_i32, %c0_i32_0 : i32, i32, i32
  }
  func.func @transform_2(%arg0: i32) -> (i32, i32) {
    %c0_i32 = arith.constant 0 : i32
    %c0_i32_0 = arith.constant 0 : i32
    %c0_i32_1 = arith.constant 0 : i32
    return %c0_i32, %c0_i32_0 : i32, i32
  }
  func.func @transform_3(%arg0: i32) -> (i32, i32) {
    %c0_i32 = arith.constant 0 : i32
    %c0_i32_0 = arith.constant 0 : i32
    %c0_i32_1 = arith.constant 0 : i32
    return %c0_i32, %c0_i32_0 : i32, i32
  }
  func.func @transform_4(%arg0: i32) -> (i32, i32) {
    %c0_i32 = arith.constant 0 : i32
    %c0_i32_0 = arith.constant 0 : i32
    %c0_i32_1 = arith.constant 0 : i32
    return %c0_i32, %c0_i32_0 : i32, i32
  }
  func.func @transform_5(%arg0: i32) -> (i32, i32) {
    %c0_i32 = arith.constant 0 : i32
    %c0_i32_0 = arith.constant 0 : i32
    %c0_i32_1 = arith.constant 0 : i32
    return %c0_i32, %c0_i32_0 : i32, i32
  }
  func.func @transform_6(%arg0: i32) -> (i32, i32) {
    %c0_i32 = arith.constant 0 : i32
    %c0_i32_0 = arith.constant 0 : i32
    %c0_i32_1 = arith.constant 0 : i32
    return %c0_i32, %c0_i32_0 : i32, i32
  }
  func.func @transform_7(%arg0: i32) -> (i32, i32, i32) {
    %c0_i32 = arith.constant 0 : i32
    %c0_i32_0 = arith.constant 0 : i32
    %c0_i32_1 = arith.constant 0 : i32
    return %arg0, %c0_i32, %c0_i32_0 : i32, i32, i32
  }
}

</mosaic_0001>

<llo_original>
// kernel: tpu_custom_call.1
$region0: #{tpu_custom_call.1}
  #allocation0 [shape = 'u32[]', space=smem, size = 0x4, offset = 0x4, fixed_abs, tag = 'smem constant byte address 0x4 - core index']
  #allocation1 [shape = 'u32[144,128]{1,0:T(1,128)}', space=vmem, size = 0x12000, scoped, tag = 'internal scratch']
  %s0 = inlined_call_operand.hbm [shape: f32[2,8,256], index: 0, kind: input, shape index: {}]
  %s1 = inlined_call_operand.vmem [shape: f32[2,8,64], index: 1, kind: input, shape index: {}]
  %s2 = inlined_call_operand.hbm [shape: f32[8,8], index: 2, kind: input, shape index: {}]
  %s3 = inlined_call_operand.hbm [shape: f32[8,8], index: 3, kind: input, shape index: {}]
  %s4 = inlined_call_operand.vmem [shape: f32[8,1], index: 4, kind: input, shape index: {}]
  %s5 = inlined_call_operand.vmem [shape: f32[8,8], index: 5, kind: input, shape index: {}]
  %s6 = inlined_call_operand.vmem [shape: f32[8,1], index: 6, kind: input, shape index: {}]
  %s7 = inlined_call_operand.vmem [shape: f32[2,8,1], index: 7, kind: output, shape index: {}]
  %s8 = sld [smem:[#allocation0]]
  $region73: #{tpu_custom_call.1} parent=0
    _
  %s10 = ssub.s32 1, %s8
  %s11 = scalar_select 0, %s10, %s8
  $region1: #{tpu_custom_call.1} parent=0
    #allocation2 [shape = 'u8[16384]{0}', space=vmem, size = 0x4000, scoped, tag = 'input window, operand 0']
    #allocation3 [shape = 's32[2]{0}', space=sflag, size = 0x8, scoped, tag = 'scoped memory for tpu_custom_call.1']
    #allocation4 [shape = 'u8[4096]{0}', space=vmem, size = 0x1000, scoped, tag = 'input window, operand 2, single buffered']
    #allocation5 [shape = 's32[1]{0}', space=sflag, size = 0x4, scoped, tag = 'scoped memory for tpu_custom_call.1']
    #allocation6 [shape = 'u8[4096]{0}', space=vmem, size = 0x1000, scoped, tag = 'input window, operand 3, single buffered']
    %12 = vsyncpa [#allocation3], 0
    %s13 = scalar_lea.sflag [#allocation3], 1
    %14 = vsyncpa %s13, 0
    %15 = vsyncpa [#allocation5], 0
    loop: start=0, step=1, limit=4
    $region2: #{tpu_custom_call.1} parent=1 // loop_pre_header
      _
    $region3: #{tpu_custom_call.1} parent=1 // loop_header
      %s17 = sphi 0, %s21
      %p18 = scmp.ge.s32.totalorder %s17, 4
      %s27 = sphi 0, %s29
      %s30 = sphi 0, %s27
      %s31 = sphi 0, %s30
      %s47 = sphi 0, %s31
      %s53 = sphi 0, %s55
      %s56 = sphi 0, %s53
      %s57 = sphi 0, %s56
      %s73 = sphi 0, %s57
      %s77 = sphi 0, %s77
      %s79 = sphi 0, %s77
      %s80 = sphi 0, %s79
      %s94 = sphi 0, %s80
      %s98 = sphi 0, %s98
      %s100 = sphi 0, %s98
      %s101 = sphi 0, %s100
      %s115 = sphi 0, %s101
      %s119 = sphi 0, %s119
      %s121 = sphi 0, %s119
      %s122 = sphi 0, %s121
      %s136 = sphi 0, %s122
      %s140 = sphi 0, %s140
      %s142 = sphi 0, %s140
      %s143 = sphi 0, %s142
      %s157 = sphi 0, %s143
      %s161 = sphi 0, %s161
      %s163 = sphi 0, %s161
      %s164 = sphi 0, %s163
      %s178 = sphi 0, %s164
      %s184 = sphi 0, %s186
      %s187 = sphi 0, %s184
      %s188 = sphi 0, %s187
      %s204 = sphi 0, %s188
    $region4: #{tpu_custom_call.1} parent=1 // loop_header_branch
      %20 = sbr.rel (%p18) target = $region8
    $region5: #{tpu_custom_call.1} parent=1 // loop_body
      %s22 = ssub.s32 %s17, 1
      %s23 = ssub.s32 %s17, 2
      %s24 = sadd.s32 %s17, 1
      %s25 = ssub.s32 %s17, %s24
      %p26 = scmp.eq.s32.totalorder %s25, 0
      %s28 = sadd.s32 %s27, 1
      %s29 = scalar_select %p26, %s27, %s28
      %p32 = pneg %p26
      %p33 = scmp.eq.s32.totalorder %s17, 1
      %p34 = por %p32, %p33
      %p35 = scmp.ne.s32.totalorder %s27, %s30
      %p36 = scmp.eq.s32.totalorder %s17, 0
      %p37 = por %p35, %p36
      %p38 = scmp.ne.s32.totalorder %s27, %s30
      %p39 = scmp.eq.s32.totalorder %s22, 1
      %p40 = por %p38, %p39
      %p41 = scmp.ne.s32.totalorder %s30, %s31
      %p42 = scmp.eq.s32.totalorder %s22, 0
      %p43 = por %p41, %p42
      %p44 = scmp.ne.s32.totalorder %s30, %s31
      %p45 = scmp.eq.s32.totalorder %s23, 1
      %p46 = por %p44, %p45
      %p48 = scmp.ne.s32.totalorder %s31, %s47
      %p49 = scmp.eq.s32.totalorder %s23, 0
      %p50 = por %p48, %p49
      %s51 = ssub.s32 %s17, %s24
      %p52 = scmp.eq.s32.totalorder %s51, 0
      %s54 = sadd.s32 %s53, 1
      %s55 = scalar_select %p52, %s53, %s54
      %p58 = pneg %p52
      %p59 = scmp.eq.s32.totalorder %s17, 1
      %p60 = por %p58, %p59
      %p61 = scmp.ne.s32.totalorder %s53, %s56
      %p62 = scmp.eq.s32.totalorder %s17, 0
      %p63 = por %p61, %p62
      %p64 = scmp.ne.s32.totalorder %s53, %s56
      %p65 = scmp.eq.s32.totalorder %s22, 1
      %p66 = por %p64, %p65
      %p67 = scmp.ne.s32.totalorder %s56, %s57
      %p68 = scmp.eq.s32.totalorder %s22, 0
      %p69 = por %p67, %p68
      %p70 = scmp.ne.s32.totalorder %s56, %s57
      %p71 = scmp.eq.s32.totalorder %s23, 1
      %p72 = por %p70, %p71
      %p74 = scmp.ne.s32.totalorder %s57, %s73
      %p75 = scmp.eq.s32.totalorder %s23, 0
      %p76 = por %p74, %p75
      %s78 = sadd.s32 %s77, 1
      %p81 = scmp.eq.s32.totalorder %s17, 1
      %p82 = scmp.ne.s32.totalorder %s77, %s79
      %p83 = scmp.eq.s32.totalorder %s17, 0
      %p84 = por %p82, %p83
      %p85 = scmp.ne.s32.totalorder %s77, %s79
      %p86 = scmp.eq.s32.totalorder %s22, 1
      %p87 = por %p85, %p86
      %p88 = scmp.ne.s32.totalorder %s79, %s80
      %p89 = scmp.eq.s32.totalorder %s22, 0
      %p90 = por %p88, %p89
      %p91 = scmp.ne.s32.totalorder %s79, %s80
      %p92 = scmp.eq.s32.totalorder %s23, 1
      %p93 = por %p91, %p92
      %p95 = scmp.ne.s32.totalorder %s80, %s94
      %p96 = scmp.eq.s32.totalorder %s23, 0
      %p97 = por %p95, %p96
      %s99 = sadd.s32 %s98, 1
      %p102 = scmp.eq.s32.totalorder %s17, 1
      %p103 = scmp.ne.s32.totalorder %s98, %s100
      %p104 = scmp.eq.s32.totalorder %s17, 0
      %p105 = por %p103, %p104
      %p106 = scmp.ne.s32.totalorder %s98, %s100
      %p107 = scmp.eq.s32.totalorder %s22, 1
      %p108 = por %p106, %p107
      %p109 = scmp.ne.s32.totalorder %s100, %s101
      %p110 = scmp.eq.s32.totalorder %s22, 0
      %p111 = por %p109, %p110
      %p112 = scmp.ne.s32.totalorder %s100, %s101
      %p113 = scmp.eq.s32.totalorder %s23, 1
      %p114 = por %p112, %p113
      %p116 = scmp.ne.s32.totalorder %s101, %s115
      %p117 = scmp.eq.s32.totalorder %s23, 0
      %p118 = por %p116, %p117
      %s120 = sadd.s32 %s119, 1
      %p123 = scmp.eq.s32.totalorder %s17, 1
      %p124 = scmp.ne.s32.totalorder %s119, %s121
      %p125 = scmp.eq.s32.totalorder %s17, 0
      %p126 = por %p124, %p125
      %p127 = scmp.ne.s32.totalorder %s119, %s121
      %p128 = scmp.eq.s32.totalorder %s22, 1
      %p129 = por %p127, %p128
      %p130 = scmp.ne.s32.totalorder %s121, %s122
      %p131 = scmp.eq.s32.totalorder %s22, 0
      %p132 = por %p130, %p131
      %p133 = scmp.ne.s32.totalorder %s121, %s122
      %p134 = scmp.eq.s32.totalorder %s23, 1
      %p135 = por %p133, %p134
      %p137 = scmp.ne.s32.totalorder %s122, %s136
      %p138 = scmp.eq.s32.totalorder %s23, 0
      %p139 = por %p137, %p138
      %s141 = sadd.s32 %s140, 1
      %p144 = scmp.eq.s32.totalorder %s17, 1
      %p145 = scmp.ne.s32.totalorder %s140, %s142
      %p146 = scmp.eq.s32.totalorder %s17, 0
      %p147 = por %p145, %p146
      %p148 = scmp.ne.s32.totalorder %s140, %s142
      %p149 = scmp.eq.s32.totalorder %s22, 1
      %p150 = por %p148, %p149
      %p151 = scmp.ne.s32.totalorder %s142, %s143
      %p152 = scmp.eq.s32.totalorder %s22, 0
      %p153 = por %p151, %p152
      %p154 = scmp.ne.s32.totalorder %s142, %s143
      %p155 = scmp.eq.s32.totalorder %s23, 1
      %p156 = por %p154, %p155
      %p158 = scmp.ne.s32.totalorder %s143, %s157
      %p159 = scmp.eq.s32.totalorder %s23, 0
      %p160 = por %p158, %p159
      %s162 = sadd.s32 %s161, 1
      %p165 = scmp.eq.s32.totalorder %s17, 1
      %p166 = scmp.ne.s32.totalorder %s161, %s163
      %p167 = scmp.eq.s32.totalorder %s17, 0
      %p168 = por %p166, %p167
      %p169 = scmp.ne.s32.totalorder %s161, %s163
      %p170 = scmp.eq.s32.totalorder %s22, 1
      %p171 = por %p169, %p170
      %p172 = scmp.ne.s32.totalorder %s163, %s164
      %p173 = scmp.eq.s32.totalorder %s22, 0
      %p174 = por %p172, %p173
      %p175 = scmp.ne.s32.totalorder %s163, %s164
      %p176 = scmp.eq.s32.totalorder %s23, 1
      %p177 = por %p175, %p176
      %p179 = scmp.ne.s32.totalorder %s164, %s178
      %p180 = scmp.eq.s32.totalorder %s23, 0
      %p181 = por %p179, %p180
      %s182 = ssub.s32 %s17, %s24
      %p183 = scmp.eq.s32.totalorder %s182, 0
      %s185 = sadd.s32 %s184, 1
      %s186 = scalar_select %p183, %s184, %s185
      %p189 = pneg %p183
      %p190 = scmp.eq.s32.totalorder %s17, 1
      %p191 = por %p189, %p190
      %p192 = scmp.ne.s32.totalorder %s184, %s187
      %p193 = scmp.eq.s32.totalorder %s17, 0
      %p194 = por %p192, %p193
      %p195 = scmp.ne.s32.totalorder %s184, %s187
      %p196 = scmp.eq.s32.totalorder %s22, 1
      %p197 = por %p195, %p196
      %p198 = scmp.ne.s32.totalorder %s187, %s188
      %p199 = scmp.eq.s32.totalorder %s22, 0
      %p200 = por %p198, %p199
      %p201 = scmp.ne.s32.totalorder %s187, %s188
      %p202 = scmp.eq.s32.totalorder %s23, 1
      %p203 = por %p201, %p202
      %p205 = scmp.ne.s32.totalorder %s188, %s204
      %p206 = scmp.eq.s32.totalorder %s23, 0
      %p207 = por %p205, %p206
      %p208 = scmp.le.s32.totalorder 1, %s17
      %p209 = scmp.lt.s32.totalorder %s17, 3
      %p210 = pnand %p208, %p209
      %p211 = pneg %p210
      // Predicated region
      $region9: #{tpu_custom_call.1} parent=5 // pred_check
        _
      $region10: #{tpu_custom_call.1} parent=5 // pred_check_branch
        %213 = sbr.rel (%p210) target = $region12
      $region11: #{tpu_custom_call.1} parent=5 // pred_region
        %s214 = ssub.s32 %s17, 1
        // Predicated region
        $region13: #{tpu_custom_call.1} parent=11 // pred_check
          %p215 = pneg %p90
        $region14: #{tpu_custom_call.1} parent=11 // pred_check_branch
          %217 = sbr.rel (%p215) target = $region16
        $region15: #{tpu_custom_call.1} parent=11 // pred_region
          %s219 = ssub.s32 128, 128
          %220 = vsyncadd [#allocation5], %s219
          %s222 = sshll.u32 [#allocation4], 4
          %s223 = int_to_ptr.vmem [resolvable:$true] %s222
          %225 = dma.hbm_to_vmem [thread:$0]  %s2, 128, %s223, [#allocation5]
        $region16: #{tpu_custom_call.1} parent=11 // pred_fallthru
          _
        // Predicated region
        $region17: #{tpu_custom_call.1} parent=11 // pred_check
          %p226 = pneg %p111
        $region18: #{tpu_custom_call.1} parent=11 // pred_check_branch
          %228 = sbr.rel (%p226) target = $region20
        $region19: #{tpu_custom_call.1} parent=11 // pred_region
          %s230 = ssub.s32 128, 128
          %231 = vsyncadd [#allocation5], %s230
          %s233 = sshll.u32 [#allocation6], 4
          %s234 = int_to_ptr.vmem [resolvable:$true] %s233
          %236 = dma.hbm_to_vmem [thread:$0]  %s3, 128, %s234, [#allocation5]
        $region20: #{tpu_custom_call.1} parent=11 // pred_fallthru
          _
        // Predicated region
        $region21: #{tpu_custom_call.1} parent=11 // pred_check
          %p237 = pneg %p132
        $region22: #{tpu_custom_call.1} parent=11 // pred_check_branch
          %239 = sbr.rel (%p237) target = $region24
        $region23: #{tpu_custom_call.1} parent=11 // pred_region
          _
        $region24: #{tpu_custom_call.1} parent=11 // pred_fallthru
          _
        // Predicated region
        $region25: #{tpu_custom_call.1} parent=11 // pred_check
          %p240 = pneg %p153
        $region26: #{tpu_custom_call.1} parent=11 // pred_check_branch
          %242 = sbr.rel (%p240) target = $region28
        $region27: #{tpu_custom_call.1} parent=11 // pred_region
          _
        $region28: #{tpu_custom_call.1} parent=11 // pred_fallthru
          _
        // Predicated region
        $region29: #{tpu_custom_call.1} parent=11 // pred_check
          %p243 = pneg %p174
        $region30: #{tpu_custom_call.1} parent=11 // pred_check_branch
          %245 = sbr.rel (%p243) target = $region32
        $region31: #{tpu_custom_call.1} parent=11 // pred_region
          _
        $region32: #{tpu_custom_call.1} parent=11 // pred_fallthru
          _
      $region12: #{tpu_custom_call.1} parent=5 // pred_fallthru
        _
      %p246 = scmp.lt.s32.totalorder %s17, 2
      // Predicated region
      $region33: #{tpu_custom_call.1} parent=5 // pred_check
        %p247 = pneg %p246
      $region34: #{tpu_custom_call.1} parent=5 // pred_check_branch
        %249 = sbr.rel (%p247) target = $region36
      $region35: #{tpu_custom_call.1} parent=5 // pred_region
        // Predicated region
        $region37: #{tpu_custom_call.1} parent=35 // pred_check
          %p250 = pneg %p37
        $region38: #{tpu_custom_call.1} parent=35 // pred_check_branch
          %252 = sbr.rel (%p250) target = $region40
        $region39: #{tpu_custom_call.1} parent=35 // pred_region
          %s253 = sand.u32 %s27, 1
          %s254 = scalar_lea.sflag [#allocation3], %s253
          %s255 = sand.u32 %s27, 1
          %s256 = smul.addr %s255, 16
          %s257 = scalar_lea.vmem [#allocation2], %s256
          %s259 = ssub.s32 256, 256
          %260 = vsyncadd %s254, %s259
          %s261 = smul.addr %s17, 2
          %s262 = smul.addr %s261, 128
          %s263 = scalar_lea.hbm %s0, %s262
          %s265 = sshll.u32 %s257, 4
          %s266 = int_to_ptr.vmem [resolvable:$true] %s265
          %268 = dma.hbm_to_vmem [thread:$0]  %s263, 256, %s266, %s254
        $region40: #{tpu_custom_call.1} parent=35 // pred_fallthru
          _
        // Predicated region
        $region41: #{tpu_custom_call.1} parent=35 // pred_check
          %p269 = pneg %p63
        $region42: #{tpu_custom_call.1} parent=35 // pred_check_branch
          %271 = sbr.rel (%p269) target = $region44
        $region43: #{tpu_custom_call.1} parent=35 // pred_region
          %p272 = scmp.lt.s32.totalorder %s17, 1
          %s273 = scalar_select %p272, %s17, 1
          %s274 = smul.addr %s273, 8
          %s275 = scalar_lea.vmem %s1, %s274
        $region44: #{tpu_custom_call.1} parent=35 // pred_fallthru
          _
      $region36: #{tpu_custom_call.1} parent=5 // pred_fallthru
        _
      %p276 = scmp.le.s32.totalorder 1, %s17
      %p277 = scmp.lt.s32.totalorder %s17, 3
      %p278 = pnand %p276, %p277
      %p279 = pneg %p278
      // Predicated region
      $region45: #{tpu_custom_call.1} parent=5 // pred_check
        _
      $region46: #{tpu_custom_call.1} parent=5 // pred_check_branch
        %281 = sbr.rel (%p278) target = $region48
      $region47: #{tpu_custom_call.1} parent=5 // pred_region
        %s282 = ssub.s32 %s17, 1
        %s283 = sand.u32 %s30, 1
        %s284 = scalar_lea.sflag [#allocation3], %s283
        %s285 = sand.u32 %s30, 1
        %s286 = smul.addr %s285, 16
        %s287 = scalar_lea.vmem [#allocation2], %s286
        // Predicated region
        $region49: #{tpu_custom_call.1} parent=47 // pred_check
          %p288 = pneg %p43
        $region50: #{tpu_custom_call.1} parent=47 // pred_check_branch
          %290 = sbr.rel (%p288) target = $region52
        $region51: #{tpu_custom_call.1} parent=47 // pred_region
          %291 = dma.done %s284, 256
        $region52: #{tpu_custom_call.1} parent=47 // pred_fallthru
          _
        // Predicated region
        $region53: #{tpu_custom_call.1} parent=47 // pred_check
          %p292 = pneg %p90
        $region54: #{tpu_custom_call.1} parent=47 // pred_check_branch
          %294 = sbr.rel (%p292) target = $region56
        $region55: #{tpu_custom_call.1} parent=47 // pred_region
          %295 = dma.done [#allocation5], 128
        $region56: #{tpu_custom_call.1} parent=47 // pred_fallthru
          _
        // Predicated region
        $region57: #{tpu_custom_call.1} parent=47 // pred_check
          %p296 = pneg %p111
        $region58: #{tpu_custom_call.1} parent=47 // pred_check_branch
          %298 = sbr.rel (%p296) target = $region60
        $region59: #{tpu_custom_call.1} parent=47 // pred_region
          %299 = dma.done [#allocation5], 128
        $region60: #{tpu_custom_call.1} parent=47 // pred_fallthru
          _
        %s300 = sand.u32 %s30, 1
        %s301 = scalar_lea.sflag [#allocation3], %s300
        %s302 = sand.u32 %s30, 1
        %s303 = smul.addr %s302, 16
        %s304 = scalar_lea.vmem [#allocation2], %s303
        %p305 = pneg %p43
        %p306 = pneg %p40
        %p307 = scmp.lt.s32.totalorder %s22, 1
        %s308 = scalar_select %p307, %s22, 1
        %s309 = smul.addr %s308, 8
        %s310 = scalar_lea.vmem %s1, %s309
        %p311 = pneg %p69
        %p312 = pneg %p66
        %p313 = pneg %p90
        %p314 = pneg %p87
        %p315 = pneg %p111
        %p316 = pneg %p108
        %p317 = pneg %p132
        %p318 = pneg %p129
        %p319 = pneg %p153
        %p320 = pneg %p150
        %p321 = pneg %p174
        %p322 = pneg %p171
        %p323 = pneg %p200
        %p324 = pneg %p197
        %p325 = scmp.lt.s32.totalorder %s22, 1
        %s326 = scalar_select %p325, %s22, 1
        %s327 = smul.addr %s326, 8
        %s328 = scalar_lea.vmem %s7, %s327
        %p329 = scmp.lt.s32.totalorder %s22, 1
        %s330 = scalar_select %p329, %s22, 1
        %s331 = smul.addr %s330, 8
        %s332 = scalar_lea.vmem %s1, %s331
        %p333 = scmp.lt.s32.totalorder %s22, 1
        %s334 = scalar_select %p333, %s22, 1
        %s335 = smul.addr %s334, 8
        %s336 = scalar_lea.vmem %s7, %s335
        %v337 = vld [vmem:[%s287] sm:$0xff]
        %v338 = vld [vmem:[%s287 + $0x8] sm:$0xff]
        %v339 = vadd.f32 %v337, %v338
        %340 = vadd.xlane.f32.xlu0 %v339
        %v341 = vpop.xlane.xlu0 %340
        %v342 = vrcp.pop 256.0
        %v343 = vmul.f32 %v341, %v342
        %v344 = vld [vmem:[%s332] sm:$0xff]
        %vm345 = vcmask 523264
        %v346 = vsel %vm345, %v344, 0.0
        %347 = vadd.xlane.f32.xlu0 %v346
        %v348 = vpop.xlane.xlu0 %347
        %v349 = vrcp.pop 64.0
        %v350 = vmul.f32 %v348, %v349
        %v351 = vld [vmem:[#allocation4] sm:$0xff]
        %v352 = vld [vmem:[#allocation6] sm:$0xff]
        %vm353 = vcmask 64512
        %v355 = vsel %vm353, %v352, 0
        %357 = vmatprep.subr.mxu0 0.0
        %358 = vmatpush1.msra.mxu0 0.0
        %359 = vmatprep.subr.mxu0 0.0
        %360 = vmatpush1.msra.mxu0 0.0
        %361 = vmatprep.subr.mxu0 0.0
        %362 = vmatpush1.msra.mxu0 0.0
        %363 = vmatprep.subr.mxu0 0.0
        %364 = vmatpush1.msra.mxu0 0.0
        %365 = vmatprep.subr.mxu0 0.0
        %366 = vmatpush1.msra.mxu0 0.0
        %367 = vmatprep.subr.mxu0 0.0
        %368 = vmatpush1.msra.mxu0 0.0
        %369 = vmatprep.subr.mxu0 0.0
        %370 = vmatpush1.msra.mxu0 0.0
        %371 = vmatprep.subr.mxu0 0.0
        %372 = vmatpush1.msra.mxu0 0.0
        %373 = vmatprep.subr.mxu0 0.0
        %374 = vmatpush1.msra.mxu0 0.0
        %375 = vmatprep.subr.mxu0 0.0
        %376 = vmatpush1.msra.mxu0 0.0
        %377 = vmatprep.subr.mxu0 0.0
        %378 = vmatpush1.msra.mxu0 0.0
        %379 = vmatprep.subr.mxu0 0.0
        %380 = vmatpush1.msra.mxu0 0.0
        %381 = vmatprep.subr.mxu0 0.0
        %382 = vmatpush1.msra.mxu0 0.0
        %383 = vmatprep.subr.mxu0 0.0
        %384 = vmatpush1.msra.mxu0 0.0
        %385 = vmatprep.subr.mxu0 0.0
        %386 = vmatpush1.msra.mxu0 0.0
        %387 = vmatprep.subr.mxu0 0.0
        %388 = vmatpush1.msra.mxu0 %v350
        %389 = vmatprep.subr.mxu0 0.0
        %390 = vmatpush2.msra.mxu0 0.0
        %391 = vmatprep.subr.mxu0 0.0
        %392 = vmatpush2.msra.mxu0 0.0
        %393 = vmatprep.subr.mxu0 0.0
        %394 = vmatpush2.msra.mxu0 0.0
        %395 = vmatprep.subr.mxu0 0.0
        %396 = vmatpush2.msra.mxu0 0.0
        %397 = vmatprep.subr.mxu0 0.0
        %398 = vmatpush2.msra.mxu0 0.0
        %399 = vmatprep.subr.mxu0 0.0
        %400 = vmatpush2.msra.mxu0 0.0
        %401 = vmatprep.subr.mxu0 0.0
        %402 = vmatpush2.msra.mxu0 0.0
        %403 = vmatprep.subr.mxu0 0.0
        %404 = vmatpush2.msra.mxu0 0.0
        %405 = vmatprep.subr.mxu0 0.0
        %406 = vmatpush2.msra.mxu0 0.0
        %407 = vmatprep.subr.mxu0 0.0
        %408 = vmatpush2.msra.mxu0 0.0
        %409 = vmatprep.subr.mxu0 0.0
        %410 = vmatpush2.msra.mxu0 0.0
        %411 = vmatprep.subr.mxu0 0.0
        %412 = vmatpush2.msra.mxu0 0.0
        %413 = vmatprep.subr.mxu0 0.0
        %414 = vmatpush2.msra.mxu0 0.0
        %415 = vmatprep.subr.mxu0 0.0
        %416 = vmatpush2.msra.mxu0 0.0
        %417 = vmatprep.subr.mxu0 0.0
        %418 = vmatpush2.msra.mxu0 0.0
        %419 = vmatprep.subr.mxu0 0.0
        %420 = vmatpush2.msra.mxu0 0.0
        %421 = vmatprep.mubr.f32.mxu0 0.0
        %422 = vmatmul.mubr.f32.gmra.mxu0 %v355
        %v423 = vpop.f32.mrf.mxu0
        %v424 = vadd.f32 0.0, %v423
        %v425 = vpop.f32.mrf.mxu0
        %426 = vdwg.mxu0
        %v428 = vsel %vm353, %v351, 0
        %430 = vmatprep.subr.mxu0 0.0
        %431 = vmatpush1.msra.mxu0 0.0
        %432 = vmatprep.subr.mxu0 0.0
        %433 = vmatpush1.msra.mxu0 0.0
        %434 = vmatprep.subr.mxu0 0.0
        %435 = vmatpush1.msra.mxu0 0.0
        %436 = vmatprep.subr.mxu0 0.0
        %437 = vmatpush1.msra.mxu0 0.0
        %438 = vmatprep.subr.mxu0 0.0
        %439 = vmatpush1.msra.mxu0 0.0
        %440 = vmatprep.subr.mxu0 0.0
        %441 = vmatpush1.msra.mxu0 0.0
        %442 = vmatprep.subr.mxu0 0.0
        %443 = vmatpush1.msra.mxu0 0.0
        %444 = vmatprep.subr.mxu0 0.0
        %445 = vmatpush1.msra.mxu0 0.0
        %446 = vmatprep.subr.mxu0 0.0
        %447 = vmatpush1.msra.mxu0 0.0
        %448 = vmatprep.subr.mxu0 0.0
        %449 = vmatpush1.msra.mxu0 0.0
        %450 = vmatprep.subr.mxu0 0.0
        %451 = vmatpush1.msra.mxu0 0.0
        %452 = vmatprep.subr.mxu0 0.0
        %453 = vmatpush1.msra.mxu0 0.0
        %454 = vmatprep.subr.mxu0 0.0
        %455 = vmatpush1.msra.mxu0 0.0
        %456 = vmatprep.subr.mxu0 0.0
        %457 = vmatpush1.msra.mxu0 0.0
        %458 = vmatprep.subr.mxu0 0.0
        %459 = vmatpush1.msra.mxu0 0.0
        %460 = vmatprep.subr.mxu0 0.0
        %461 = vmatpush1.msra.mxu0 %v343
        %462 = vmatprep.subr.mxu0 0.0
        %463 = vmatpush2.msra.mxu0 0.0
        %464 = vmatprep.subr.mxu0 0.0
        %465 = vmatpush2.msra.mxu0 0.0
        %466 = vmatprep.subr.mxu0 0.0
        %467 = vmatpush2.msra.mxu0 0.0
        %468 = vmatprep.subr.mxu0 0.0
        %469 = vmatpush2.msra.mxu0 0.0
        %470 = vmatprep.subr.mxu0 0.0
        %471 = vmatpush2.msra.mxu0 0.0
        %472 = vmatprep.subr.mxu0 0.0
        %473 = vmatpush2.msra.mxu0 0.0
        %474 = vmatprep.subr.mxu0 0.0
        %475 = vmatpush2.msra.mxu0 0.0
        %476 = vmatprep.subr.mxu0 0.0
        %477 = vmatpush2.msra.mxu0 0.0
        %478 = vmatprep.subr.mxu0 0.0
        %479 = vmatpush2.msra.mxu0 0.0
        %480 = vmatprep.subr.mxu0 0.0
        %481 = vmatpush2.msra.mxu0 0.0
        %482 = vmatprep.subr.mxu0 0.0
        %483 = vmatpush2.msra.mxu0 0.0
        %484 = vmatprep.subr.mxu0 0.0
        %485 = vmatpush2.msra.mxu0 0.0
        %486 = vmatprep.subr.mxu0 0.0
        %487 = vmatpush2.msra.mxu0 0.0
        %488 = vmatprep.subr.mxu0 0.0
        %489 = vmatpush2.msra.mxu0 0.0
        %490 = vmatprep.subr.mxu0 0.0
        %491 = vmatpush2.msra.mxu0 0.0
        %492 = vmatprep.subr.mxu0 0.0
        %493 = vmatpush2.msra.mxu0 0.0
        %494 = vmatprep.mubr.f32.mxu0 0.0
        %495 = vmatmul.mubr.f32.gmra.mxu0 %v428
        %v496 = vpop.f32.mrf.mxu0
        %v497 = vadd.f32 %v424, %v496
        %v498 = vpop.f32.mrf.mxu0
        %499 = vdwg.mxu0
        %v500 = vld [vmem:[%s4] sm:$0xff]
        %v501 = vadd.f32 %v497, %v500
        %v502 = vmax.f32 %v501, 0.0
        %v503 = vld [vmem:[%s5] sm:$0xff]
        %v504 = vld [vmem:[%s6] sm:$0xff]
        %v506 = vsel %vm353, %v503, 0
        %508 = vmatprep.subr.mxu0 0.0
        %509 = vmatpush1.msra.mxu0 0.0
        %510 = vmatprep.subr.mxu0 0.0
        %511 = vmatpush1.msra.mxu0 0.0
        %512 = vmatprep.subr.mxu0 0.0
        %513 = vmatpush1.msra.mxu0 0.0
        %514 = vmatprep.subr.mxu0 0.0
        %515 = vmatpush1.msra.mxu0 0.0
        %516 = vmatprep.subr.mxu0 0.0
        %517 = vmatpush1.msra.mxu0 0.0
        %518 = vmatprep.subr.mxu0 0.0
        %519 = vmatpush1.msra.mxu0 0.0
        %520 = vmatprep.subr.mxu0 0.0
        %521 = vmatpush1.msra.mxu0 0.0
        %522 = vmatprep.subr.mxu0 0.0
        %523 = vmatpush1.msra.mxu0 0.0
        %524 = vmatprep.subr.mxu0 0.0
        %525 = vmatpush1.msra.mxu0 0.0
        %526 = vmatprep.subr.mxu0 0.0
        %527 = vmatpush1.msra.mxu0 0.0
        %528 = vmatprep.subr.mxu0 0.0
        %529 = vmatpush1.msra.mxu0 0.0
        %530 = vmatprep.subr.mxu0 0.0
        %531 = vmatpush1.msra.mxu0 0.0
        %532 = vmatprep.subr.mxu0 0.0
        %533 = vmatpush1.msra.mxu0 0.0
        %534 = vmatprep.subr.mxu0 0.0
        %535 = vmatpush1.msra.mxu0 0.0
        %536 = vmatprep.subr.mxu0 0.0
        %537 = vmatpush1.msra.mxu0 0.0
        %538 = vmatprep.subr.mxu0 0.0
        %539 = vmatpush1.msra.mxu0 %v502
        %540 = vmatprep.subr.mxu0 0.0
        %541 = vmatpush2.msra.mxu0 0.0
        %542 = vmatprep.subr.mxu0 0.0
        %543 = vmatpush2.msra.mxu0 0.0
        %544 = vmatprep.subr.mxu0 0.0
        %545 = vmatpush2.msra.mxu0 0.0
        %546 = vmatprep.subr.mxu0 0.0
        %547 = vmatpush2.msra.mxu0 0.0
        %548 = vmatprep.subr.mxu0 0.0
        %549 = vmatpush2.msra.mxu0 0.0
        %550 = vmatprep.subr.mxu0 0.0
        %551 = vmatpush2.msra.mxu0 0.0
        %552 = vmatprep.subr.mxu0 0.0
        %553 = vmatpush2.msra.mxu0 0.0
        %554 = vmatprep.subr.mxu0 0.0
        %555 = vmatpush2.msra.mxu0 0.0
        %556 = vmatprep.subr.mxu0 0.0
        %557 = vmatpush2.msra.mxu0 0.0
        %558 = vmatprep.subr.mxu0 0.0
        %559 = vmatpush2.msra.mxu0 0.0
        %560 = vmatprep.subr.mxu0 0.0
        %561 = vmatpush2.msra.mxu0 0.0
        %562 = vmatprep.subr.mxu0 0.0
        %563 = vmatpush2.msra.mxu0 0.0
        %564 = vmatprep.subr.mxu0 0.0
        %565 = vmatpush2.msra.mxu0 0.0
        %566 = vmatprep.subr.mxu0 0.0
        %567 = vmatpush2.msra.mxu0 0.0
        %568 = vmatprep.subr.mxu0 0.0
        %569 = vmatpush2.msra.mxu0 0.0
        %570 = vmatprep.subr.mxu0 0.0
        %571 = vmatpush2.msra.mxu0 0.0
        %572 = vmatprep.mubr.f32.mxu0 0.0
        %573 = vmatmul.mubr.f32.gmra.mxu0 %v506
        %v574 = vpop.f32.mrf.mxu0
        %v575 = vadd.f32 %v504, %v574
        %v576 = vpop.f32.mrf.mxu0
        %577 = vdwg.mxu0
        %v578 = vxor.u32 %v575, 2147483648
        %v579 = vmul.f32 %v578, 1.442695
        %v580 = vpow.pop %v579
        %v581 = vadd.f32 %v580, 1.0
        %v582 = vrcp.pop %v581
        %v583 = vmul.f32 1.0, %v582
        %vm584 = vcmask 7168
        %585 = vst.msk [vmem:[%s336] sm:$0xff] %vm584, %v583
        %p586 = scmp.lt.s32.totalorder %s22, 1
        %s587 = scalar_select %p586, %s22, 1
        %s588 = smul.addr %s587, 8
        %s589 = scalar_lea.vmem %s7, %s588
        // Predicated region
        $region61: #{tpu_custom_call.1} parent=47 // pred_check
          %p590 = pneg %p197
        $region62: #{tpu_custom_call.1} parent=47 // pred_check_branch
          %592 = sbr.rel (%p590) target = $region64
        $region63: #{tpu_custom_call.1} parent=47 // pred_region
          _
        $region64: #{tpu_custom_call.1} parent=47 // pred_fallthru
          _
      $region48: #{tpu_custom_call.1} parent=5 // pred_fallthru
        _
      %p593 = scmp.le.s32.totalorder 2, %s17
      // Predicated region
      $region65: #{tpu_custom_call.1} parent=5 // pred_check
        %p594 = pneg %p593
      $region66: #{tpu_custom_call.1} parent=5 // pred_check_branch
        %596 = sbr.rel (%p594) target = $region68
      $region67: #{tpu_custom_call.1} parent=5 // pred_region
        %s597 = ssub.s32 %s17, 2
        // Predicated region
        $region69: #{tpu_custom_call.1} parent=67 // pred_check
          %p598 = pneg %p203
        $region70: #{tpu_custom_call.1} parent=67 // pred_check_branch
          %600 = sbr.rel (%p598) target = $region72
        $region71: #{tpu_custom_call.1} parent=67 // pred_region
          %p601 = scmp.lt.s32.totalorder %s23, 1
          %s602 = scalar_select %p601, %s23, 1
          %s603 = smul.addr %s602, 8
          %s604 = scalar_lea.vmem %s7, %s603
        $region72: #{tpu_custom_call.1} parent=67 // pred_fallthru
          _
      $region68: #{tpu_custom_call.1} parent=5 // pred_fallthru
        _
    $region6: #{tpu_custom_call.1} parent=1 // loop_footer
      %s21 = sadd.s32 1, %s17
    $region7: #{tpu_custom_call.1} parent=1 // loop_footer_branch
      %16 = sbr.rel target = $region3
    $region8: #{tpu_custom_call.1} parent=1 // loop_exit
      _
    %605 = vsyncpa [#allocation3], 1
    %s606 = scalar_lea.sflag [#allocation3], 1
    %607 = vsyncpa %s606, 1
    %608 = vsyncpa [#allocation5], 1

</llo_original>
